<compile_context>
chip_gen: v5e
topology: v5e:2x2
jax: 0.10.0
libtpu: 0.0.40
codegen_flags: <defaults>
</compile_context>

<pallas_src>
import functools
from collections import Counter

import numpy as np
import jax
import jax.numpy as jnp
from jax import lax
from jax.experimental import pallas as pl
from jax.experimental.pallas import tpu as pltpu


_KW_PAD = 8     # key word-rows padded to 8 -> (8, 128) aligned slab transposes
_SUB = 8        # keys per inner compare chunk (bounds the (SUB, tm) eq live range)
_GROUP = 128    # keys per aligned slab load / transpose


# ------------------------------- kernel ------------------------------------ #

def _count_kernel(q_ref, k_ref, o_ref, *, kw):
    """o[0, m] += sum_j all_w(k[w, j] == q[w, m]) over this key block.

    q_ref: (kw, tm)   query key-words, lane-dense (queries on lanes)
    k_ref: (8,  tkb)  key key-words, lane-dense (rows >= kw are padding)
    o_ref: (1,  tm)   int32 occurrence counts, accumulated over the key axis
    """
    @pl.when(pl.program_id(1) == 0)
    def _init():
        o_ref[...] = jnp.zeros_like(o_ref)

    q = q_ref[...]                                   # (kw, tm)
    tm = q.shape[1]
    ngroups = k_ref.shape[1] // _GROUP               # static

    def group_body(g, acc):
        off = pl.multiple_of(g * _GROUP, _GROUP)
        slab = k_ref[:, pl.ds(off, _GROUP)]          # (8, 128) aligned vreg load
        kt = jnp.transpose(slab, (1, 0))             # (128, 8)  XLU (idle slot)
        for c in range(_GROUP // _SUB):              # 16 static sub-chunks of 8 keys
            kc = kt[c * _SUB:(c + 1) * _SUB, :]      # (8, 8) keys on sublanes
            eq = kc[:, 0:1] == q[0:1, :]             # (8, tm)
            for w in range(1, kw):
                eq = jnp.logical_and(eq, kc[:, w:w + 1] == q[w:w + 1, :])
            acc = acc + jnp.sum(eq.astype(jnp.int32), axis=0, keepdims=True)
        return acc

    acc = lax.fori_loop(0, ngroups, group_body,
                        jnp.zeros((1, tm), jnp.int32))
    o_ref[...] += acc


# --------------------------- pallas_call wrapper ---------------------------- #

def _count_matches(q_keys, k_keys, kw, tm, tkb, nq_pad, nk_pad):
    return pl.pallas_call(
        functools.partial(_count_kernel, kw=kw),
        out_shape=jax.ShapeDtypeStruct((1, nq_pad), jnp.int32),
        grid=(nq_pad // tm, nk_pad // tkb),
        in_specs=[
            pl.BlockSpec((kw, tm), lambda i, k: (0, i)),        # queries
            pl.BlockSpec((_KW_PAD, tkb), lambda i, k: (0, k)),  # keys (resident if 1 tile)
        ],
        out_specs=pl.BlockSpec((1, tm), lambda i, k: (0, i)),   # lane-dense counts
        compiler_params=pltpu.CompilerParams(
            dimension_semantics=("parallel", "arbitrary")),
    )(q_keys, k_keys)


# ------------------------------ public API ---------------------------------- #

def _tiles(n, max_tile, *, min_tiles=1, prefer_even=False):
    """Pick (tile, padded) with tile a multiple of 128 and padded = ntiles*tile >= n."""
    ntiles = max(pl.cdiv(n, max_tile), min_tiles)
    if prefer_even and ntiles > 1 and ntiles % 2 == 1:
        ntiles += 1                      # even tile count keeps both v7x TCs busy
    tile = ((pl.cdiv(n, ntiles) + 127) // 128) * 128
    return tile, ntiles * tile


def prevent_leakage(metapath_instances, test_data, *, tm_max=1024, tk_max=131072,
                    force_words=None):
    """Returns (combined_rows, keep_mask). Rows where keep_mask is True are the
    rows pandas drop_duplicates(subset=['g','t','d'], keep=False) would retain,
    in order."""
    meta = jnp.asarray(metapath_instances)[:, :3].astype(jnp.int32)
    test = jnp.asarray(test_data)[:, :3].astype(jnp.int32)
    combined = jnp.concatenate([meta, test], axis=0)            # (N, 3), on device
    n = combined.shape[0]
    if n == 0:
        return combined, jnp.zeros((0,), bool)

    # Column ranges: only a tiny (3,)-scalar D2H pull to choose the packing at
    # trace time; the shift/pack itself stays on device.
    mins = jnp.min(combined, axis=0)
    lo = [int(v) for v in np.asarray(jax.device_get(mins))]
    hi = [int(v) for v in np.asarray(jax.device_get(jnp.max(combined, axis=0)))]
    r = [h - l + 1 for h, l in zip(hi, lo)]
    I32MAX = int(np.iinfo(np.int32).max)

    s = combined - mins[None, :]          # each shifted column in [0, r_c)
    # TODO(synk): if a single column spans more than int32 the shifted words wrap;
    #             the mapping stays injective but the -1 pad sentinel is then not
    #             100% safe.  Unreachable for int32 node-id inputs of this module.
    if force_words is None:
        if r[0] * r[1] * r[2] <= I32MAX:
            nwords = 1
        elif r[1] * r[2] <= I32MAX or r[0] * r[1] <= I32MAX:
            nwords = 2
        else:
            nwords = 3
    else:
        nwords = int(force_words)

    if nwords == 1:
        words = [(s[:, 0] * r[1] + s[:, 1]) * r[2] + s[:, 2]]
    elif nwords == 2 and r[1] * r[2] <= I32MAX:
        words = [s[:, 0], s[:, 1] * r[2] + s[:, 2]]
    elif nwords == 2:
        words = [s[:, 0] * r[1] + s[:, 1], s[:, 2]]
    else:
        words = [s[:, 0], s[:, 1], s[:, 2]]
    kw = len(words)
    keys = jnp.stack(words, axis=0).astype(jnp.int32)           # (kw, n), all >= 0

    # Independent query/key padding (no lcm blow-up); >=2 (even) query tiles for v7x.
    tm, nq_pad = _tiles(n, tm_max, min_tiles=2 if n > 128 else 1, prefer_even=True)
    tkb, nk_pad = _tiles(n, tk_max)

    # -1 never matches a real (shifted, >= 0) key word; padded-query counts are
    # sliced off below.  Key word-rows kw..7 are never read by the kernel.
    q_keys = jnp.pad(keys, ((0, 0), (0, nq_pad - n)), constant_values=-1)
    k_keys = jnp.pad(keys, ((0, _KW_PAD - kw), (0, nk_pad - n)), constant_values=-1)

    counts = _count_matches(q_keys, k_keys, kw, tm, tkb, nq_pad, nk_pad)
    keep_mask = counts[0, :n] == 1
    return combined, keep_mask


# ------------------------------- reference ---------------------------------- #

def _reference(meta_np, test_np):
    """Numpy reference of pandas drop_duplicates(subset=['g','t','d'], keep=False)."""
    combined = np.concatenate([meta_np[:, :3], test_np[:, :3]], axis=0)
    c = Counter(map(tuple, combined.tolist()))
    keep = np.array([c[tuple(row)] == 1 for row in combined.tolist()], dtype=bool)
    return combined[keep]


if __name__ == "__main__":
    key = jax.random.PRNGKey(0)
    k1, k2 = jax.random.split(key)

    # Small deterministic shapes: 32 metapath instances, 8 test positives,
    # values in a small range so overlaps (leakage) actually occur.
    metapath_instances = jax.random.randint(k1, (32, 3), 0, 6, dtype=jnp.int32)
    test_data = jax.random.randint(k2, (8, 3), 0, 6, dtype=jnp.int32)

    expected = _reference(np.asarray(metapath_instances), np.asarray(test_data))

    # Exercise the 1-word, 2-word and 3-word key paths of the same kernel.
    for nwords in (None, 2, 3):
        combined, keep_mask = prevent_leakage(metapath_instances, test_data,
                                              force_words=nwords)
        jax.block_until_ready(keep_mask)
        kept = np.asarray(combined)[np.asarray(keep_mask)]   # dynamic-size glue
        assert kept.shape == expected.shape, (nwords, kept.shape, expected.shape)
        assert np.array_equal(kept, expected), nwords

    print("KERNEL_OK")
</pallas_src>

<mosaic_0001>
module attributes {stable_mosaic.version = 11 : i64} {
  func.func @_count_kernel(%arg0: i32, %arg1: i32, %arg2: memref<1x128xi32, #tpu.memory_space<vmem>>, %arg3: memref<8x128xi32, #tpu.memory_space<vmem>>, %arg4: memref<1x128xi32, #tpu.memory_space<vmem>>) attributes {dimension_semantics = [#tpu.dimension_semantics<parallel>, #tpu.dimension_semantics<arbitrary>], iteration_bounds = array<i64: 1, 1>, scalar_prefetch = 0 : i64, scratch_operands = 0 : i64, tpu.core_type = #tpu.core_type<tc>, window_params = [{transform_indices = @transform_0, window_bounds = array<i64: 1, 128>}, {transform_indices = @transform_1, window_bounds = array<i64: 8, 128>}, {transform_indices = @transform_2, window_bounds = array<i64: 1, 128>}]} {
    %c0_i32 = arith.constant 0 : i32
    %0 = arith.cmpi eq, %arg1, %c0_i32 : i32
    %1 = arith.extui %0 : i1 to i32
    %c0_i32_0 = arith.constant 0 : i32
    %2 = arith.cmpi ne, %1, %c0_i32_0 : i32
    scf.if %2 {
      %c0_i32_24 = arith.constant 0 : i32
      %157 = vector.broadcast %c0_i32_24 : i32 to vector<1x128xi32>
      %c0_25 = arith.constant 0 : index
      %c0_26 = arith.constant 0 : index
      %158 = vector.load %arg4[%c0_25, %c0_26] : memref<1x128xi32, #tpu.memory_space<vmem>>, vector<1x128xi32>
      tpu.vector_store %arg4[%c0_25, %c0_26], %157 {strides = array<i32>} : memref<1x128xi32, #tpu.memory_space<vmem>>, vector<1x128xi32>,
    } else {
    }
    %c0 = arith.constant 0 : index
    %c0_1 = arith.constant 0 : index
    %3 = vector.load %arg2[%c0, %c0_1] : memref<1x128xi32, #tpu.memory_space<vmem>>, vector<1x128xi32>
    %c0_i32_2 = arith.constant 0 : i32
    %4 = vector.broadcast %c0_i32_2 : i32 to vector<1x128xi32>
    %c0_i32_3 = arith.constant 0 : i32
    %c128_i32 = arith.constant 128 : i32
    %5 = arith.muli %c0_i32_3, %c128_i32 : i32
    %6 = tpu.assume_multiple %5, 128 : i32
    %c0_4 = arith.constant 0 : index
    %7 = arith.index_cast %6 : i32 to index
    %8 = vector.load %arg3[%c0_4, %7] : memref<8x128xi32, #tpu.memory_space<vmem>>, vector<8x128xi32>
    %9 = tpu.transpose %8, [1, 0] : vector<8x128xi32> -> vector<128x8xi32>
    %10 = vector.extract_strided_slice %9 {offsets = [0, 0], sizes = [8, 8], strides = [1, 1]} : vector<128x8xi32> to vector<8x8xi32>
    %11 = vector.extract_strided_slice %10 {offsets = [0, 0], sizes = [8, 1], strides = [1, 1]} : vector<8x8xi32> to vector<8x1xi32>
    %12 = vector.broadcast %11 : vector<8x1xi32> to vector<8x128xi32>
    %13 = vector.broadcast %3 : vector<1x128xi32> to vector<8x128xi32>
    %14 = arith.cmpi eq, %12, %13 : vector<8x128xi32>
    %15 = arith.extui %14 : vector<8x128xi1> to vector<8x128xi32>
    %cst = arith.constant dense<0> : vector<128xi32>
    %16 = vector.multi_reduction <add>, %15, %cst [0] : vector<8x128xi32> to vector<128xi32>
    %17 = vector.shape_cast %16 : vector<128xi32> to vector<1x128xi32>
    %18 = arith.addi %4, %17 : vector<1x128xi32>
    %19 = vector.extract_strided_slice %9 {offsets = [8, 0], sizes = [8, 8], strides = [1, 1]} : vector<128x8xi32> to vector<8x8xi32>
    %20 = vector.extract_strided_slice %19 {offsets = [0, 0], sizes = [8, 1], strides = [1, 1]} : vector<8x8xi32> to vector<8x1xi32>
    %21 = vector.broadcast %20 : vector<8x1xi32> to vector<8x128xi32>
    %22 = vector.broadcast %3 : vector<1x128xi32> to vector<8x128xi32>
    %23 = arith.cmpi eq, %21, %22 : vector<8x128xi32>
    %24 = arith.extui %23 : vector<8x128xi1> to vector<8x128xi32>
    %cst_5 = arith.constant dense<0> : vector<128xi32>
    %25 = vector.multi_reduction <add>, %24, %cst_5 [0] : vector<8x128xi32> to vector<128xi32>
    %26 = vector.shape_cast %25 : vector<128xi32> to vector<1x128xi32>
    %27 = arith.addi %18, %26 : vector<1x128xi32>
    %28 = vector.extract_strided_slice %9 {offsets = [16, 0], sizes = [8, 8], strides = [1, 1]} : vector<128x8xi32> to vector<8x8xi32>
    %29 = vector.extract_strided_slice %28 {offsets = [0, 0], sizes = [8, 1], strides = [1, 1]} : vector<8x8xi32> to vector<8x1xi32>
    %30 = vector.broadcast %29 : vector<8x1xi32> to vector<8x128xi32>
    %31 = vector.broadcast %3 : vector<1x128xi32> to vector<8x128xi32>
    %32 = arith.cmpi eq, %30, %31 : vector<8x128xi32>
    %33 = arith.extui %32 : vector<8x128xi1> to vector<8x128xi32>
    %cst_6 = arith.constant dense<0> : vector<128xi32>
    %34 = vector.multi_reduction <add>, %33, %cst_6 [0] : vector<8x128xi32> to vector<128xi32>
    %35 = vector.shape_cast %34 : vector<128xi32> to vector<1x128xi32>
    %36 = arith.addi %27, %35 : vector<1x128xi32>
    %37 = vector.extract_strided_slice %9 {offsets = [24, 0], sizes = [8, 8], strides = [1, 1]} : vector<128x8xi32> to vector<8x8xi32>
    %38 = vector.extract_strided_slice %37 {offsets = [0, 0], sizes = [8, 1], strides = [1, 1]} : vector<8x8xi32> to vector<8x1xi32>
    %39 = vector.broadcast %38 : vector<8x1xi32> to vector<8x128xi32>
    %40 = vector.broadcast %3 : vector<1x128xi32> to vector<8x128xi32>
    %41 = arith.cmpi eq, %39, %40 : vector<8x128xi32>
    %42 = arith.extui %41 : vector<8x128xi1> to vector<8x128xi32>
    %cst_7 = arith.constant dense<0> : vector<128xi32>
    %43 = vector.multi_reduction <add>, %42, %cst_7 [0] : vector<8x128xi32> to vector<128xi32>
    %44 = vector.shape_cast %43 : vector<128xi32> to vector<1x128xi32>
    %45 = arith.addi %36, %44 : vector<1x128xi32>
    %46 = vector.extract_strided_slice %9 {offsets = [32, 0], sizes = [8, 8], strides = [1, 1]} : vector<128x8xi32> to vector<8x8xi32>
    %47 = vector.extract_strided_slice %46 {offsets = [0, 0], sizes = [8, 1], strides = [1, 1]} : vector<8x8xi32> to vector<8x1xi32>
    %48 = vector.broadcast %47 : vector<8x1xi32> to vector<8x128xi32>
    %49 = vector.broadcast %3 : vector<1x128xi32> to vector<8x128xi32>
    %50 = arith.cmpi eq, %48, %49 : vector<8x128xi32>
    %51 = arith.extui %50 : vector<8x128xi1> to vector<8x128xi32>
    %cst_8 = arith.constant dense<0> : vector<128xi32>
    %52 = vector.multi_reduction <add>, %51, %cst_8 [0] : vector<8x128xi32> to vector<128xi32>
    %53 = vector.shape_cast %52 : vector<128xi32> to vector<1x128xi32>
    %54 = arith.addi %45, %53 : vector<1x128xi32>
    %55 = vector.extract_strided_slice %9 {offsets = [40, 0], sizes = [8, 8], strides = [1, 1]} : vector<128x8xi32> to vector<8x8xi32>
    %56 = vector.extract_strided_slice %55 {offsets = [0, 0], sizes = [8, 1], strides = [1, 1]} : vector<8x8xi32> to vector<8x1xi32>
    %57 = vector.broadcast %56 : vector<8x1xi32> to vector<8x128xi32>
    %58 = vector.broadcast %3 : vector<1x128xi32> to vector<8x128xi32>
    %59 = arith.cmpi eq, %57, %58 : vector<8x128xi32>
    %60 = arith.extui %59 : vector<8x128xi1> to vector<8x128xi32>
    %cst_9 = arith.constant dense<0> : vector<128xi32>
    %61 = vector.multi_reduction <add>, %60, %cst_9 [0] : vector<8x128xi32> to vector<128xi32>
    %62 = vector.shape_cast %61 : vector<128xi32> to vector<1x128xi32>
    %63 = arith.addi %54, %62 : vector<1x128xi32>
    %64 = vector.extract_strided_slice %9 {offsets = [48, 0], sizes = [8, 8], strides = [1, 1]} : vector<128x8xi32> to vector<8x8xi32>
    %65 = vector.extract_strided_slice %64 {offsets = [0, 0], sizes = [8, 1], strides = [1, 1]} : vector<8x8xi32> to vector<8x1xi32>
    %66 = vector.broadcast %65 : vector<8x1xi32> to vector<8x128xi32>
    %67 = vector.broadcast %3 : vector<1x128xi32> to vector<8x128xi32>
    %68 = arith.cmpi eq, %66, %67 : vector<8x128xi32>
    %69 = arith.extui %68 : vector<8x128xi1> to vector<8x128xi32>
    %cst_10 = arith.constant dense<0> : vector<128xi32>
    %70 = vector.multi_reduction <add>, %69, %cst_10 [0] : vector<8x128xi32> to vector<128xi32>
    %71 = vector.shape_cast %70 : vector<128xi32> to vector<1x128xi32>
    %72 = arith.addi %63, %71 : vector<1x128xi32>
    %73 = vector.extract_strided_slice %9 {offsets = [56, 0], sizes = [8, 8], strides = [1, 1]} : vector<128x8xi32> to vector<8x8xi32>
    %74 = vector.extract_strided_slice %73 {offsets = [0, 0], sizes = [8, 1], strides = [1, 1]} : vector<8x8xi32> to vector<8x1xi32>
    %75 = vector.broadcast %74 : vector<8x1xi32> to vector<8x128xi32>
    %76 = vector.broadcast %3 : vector<1x128xi32> to vector<8x128xi32>
    %77 = arith.cmpi eq, %75, %76 : vector<8x128xi32>
    %78 = arith.extui %77 : vector<8x128xi1> to vector<8x128xi32>
    %cst_11 = arith.constant dense<0> : vector<128xi32>
    %79 = vector.multi_reduction <add>, %78, %cst_11 [0] : vector<8x128xi32> to vector<128xi32>
    %80 = vector.shape_cast %79 : vector<128xi32> to vector<1x128xi32>
    %81 = arith.addi %72, %80 : vector<1x128xi32>
    %82 = vector.extract_strided_slice %9 {offsets = [64, 0], sizes = [8, 8], strides = [1, 1]} : vector<128x8xi32> to vector<8x8xi32>
    %83 = vector.extract_strided_slice %82 {offsets = [0, 0], sizes = [8, 1], strides = [1, 1]} : vector<8x8xi32> to vector<8x1xi32>
    %84 = vector.broadcast %83 : vector<8x1xi32> to vector<8x128xi32>
    %85 = vector.broadcast %3 : vector<1x128xi32> to vector<8x128xi32>
    %86 = arith.cmpi eq, %84, %85 : vector<8x128xi32>
    %87 = arith.extui %86 : vector<8x128xi1> to vector<8x128xi32>
    %cst_12 = arith.constant dense<0> : vector<128xi32>
    %88 = vector.multi_reduction <add>, %87, %cst_12 [0] : vector<8x128xi32> to vector<128xi32>
    %89 = vector.shape_cast %88 : vector<128xi32> to vector<1x128xi32>
    %90 = arith.addi %81, %89 : vector<1x128xi32>
    %91 = vector.extract_strided_slice %9 {offsets = [72, 0], sizes = [8, 8], strides = [1, 1]} : vector<128x8xi32> to vector<8x8xi32>
    %92 = vector.extract_strided_slice %91 {offsets = [0, 0], sizes = [8, 1], strides = [1, 1]} : vector<8x8xi32> to vector<8x1xi32>
    %93 = vector.broadcast %92 : vector<8x1xi32> to vector<8x128xi32>
    %94 = vector.broadcast %3 : vector<1x128xi32> to vector<8x128xi32>
    %95 = arith.cmpi eq, %93, %94 : vector<8x128xi32>
    %96 = arith.extui %95 : vector<8x128xi1> to vector<8x128xi32>
    %cst_13 = arith.constant dense<0> : vector<128xi32>
    %97 = vector.multi_reduction <add>, %96, %cst_13 [0] : vector<8x128xi32> to vector<128xi32>
    %98 = vector.shape_cast %97 : vector<128xi32> to vector<1x128xi32>
    %99 = arith.addi %90, %98 : vector<1x128xi32>
    %100 = vector.extract_strided_slice %9 {offsets = [80, 0], sizes = [8, 8], strides = [1, 1]} : vector<128x8xi32> to vector<8x8xi32>
    %101 = vector.extract_strided_slice %100 {offsets = [0, 0], sizes = [8, 1], strides = [1, 1]} : vector<8x8xi32> to vector<8x1xi32>
    %102 = vector.broadcast %101 : vector<8x1xi32> to vector<8x128xi32>
    %103 = vector.broadcast %3 : vector<1x128xi32> to vector<8x128xi32>
    %104 = arith.cmpi eq, %102, %103 : vector<8x128xi32>
    %105 = arith.extui %104 : vector<8x128xi1> to vector<8x128xi32>
    %cst_14 = arith.constant dense<0> : vector<128xi32>
    %106 = vector.multi_reduction <add>, %105, %cst_14 [0] : vector<8x128xi32> to vector<128xi32>
    %107 = vector.shape_cast %106 : vector<128xi32> to vector<1x128xi32>
    %108 = arith.addi %99, %107 : vector<1x128xi32>
    %109 = vector.extract_strided_slice %9 {offsets = [88, 0], sizes = [8, 8], strides = [1, 1]} : vector<128x8xi32> to vector<8x8xi32>
    %110 = vector.extract_strided_slice %109 {offsets = [0, 0], sizes = [8, 1], strides = [1, 1]} : vector<8x8xi32> to vector<8x1xi32>
    %111 = vector.broadcast %110 : vector<8x1xi32> to vector<8x128xi32>
    %112 = vector.broadcast %3 : vector<1x128xi32> to vector<8x128xi32>
    %113 = arith.cmpi eq, %111, %112 : vector<8x128xi32>
    %114 = arith.extui %113 : vector<8x128xi1> to vector<8x128xi32>
    %cst_15 = arith.constant dense<0> : vector<128xi32>
    %115 = vector.multi_reduction <add>, %114, %cst_15 [0] : vector<8x128xi32> to vector<128xi32>
    %116 = vector.shape_cast %115 : vector<128xi32> to vector<1x128xi32>
    %117 = arith.addi %108, %116 : vector<1x128xi32>
    %118 = vector.extract_strided_slice %9 {offsets = [96, 0], sizes = [8, 8], strides = [1, 1]} : vector<128x8xi32> to vector<8x8xi32>
    %119 = vector.extract_strided_slice %118 {offsets = [0, 0], sizes = [8, 1], strides = [1, 1]} : vector<8x8xi32> to vector<8x1xi32>
    %120 = vector.broadcast %119 : vector<8x1xi32> to vector<8x128xi32>
    %121 = vector.broadcast %3 : vector<1x128xi32> to vector<8x128xi32>
    %122 = arith.cmpi eq, %120, %121 : vector<8x128xi32>
    %123 = arith.extui %122 : vector<8x128xi1> to vector<8x128xi32>
    %cst_16 = arith.constant dense<0> : vector<128xi32>
    %124 = vector.multi_reduction <add>, %123, %cst_16 [0] : vector<8x128xi32> to vector<128xi32>
    %125 = vector.shape_cast %124 : vector<128xi32> to vector<1x128xi32>
    %126 = arith.addi %117, %125 : vector<1x128xi32>
    %127 = vector.extract_strided_slice %9 {offsets = [104, 0], sizes = [8, 8], strides = [1, 1]} : vector<128x8xi32> to vector<8x8xi32>
    %128 = vector.extract_strided_slice %127 {offsets = [0, 0], sizes = [8, 1], strides = [1, 1]} : vector<8x8xi32> to vector<8x1xi32>
    %129 = vector.broadcast %128 : vector<8x1xi32> to vector<8x128xi32>
    %130 = vector.broadcast %3 : vector<1x128xi32> to vector<8x128xi32>
    %131 = arith.cmpi eq, %129, %130 : vector<8x128xi32>
    %132 = arith.extui %131 : vector<8x128xi1> to vector<8x128xi32>
    %cst_17 = arith.constant dense<0> : vector<128xi32>
    %133 = vector.multi_reduction <add>, %132, %cst_17 [0] : vector<8x128xi32> to vector<128xi32>
    %134 = vector.shape_cast %133 : vector<128xi32> to vector<1x128xi32>
    %135 = arith.addi %126, %134 : vector<1x128xi32>
    %136 = vector.extract_strided_slice %9 {offsets = [112, 0], sizes = [8, 8], strides = [1, 1]} : vector<128x8xi32> to vector<8x8xi32>
    %137 = vector.extract_strided_slice %136 {offsets = [0, 0], sizes = [8, 1], strides = [1, 1]} : vector<8x8xi32> to vector<8x1xi32>
    %138 = vector.broadcast %137 : vector<8x1xi32> to vector<8x128xi32>
    %139 = vector.broadcast %3 : vector<1x128xi32> to vector<8x128xi32>
    %140 = arith.cmpi eq, %138, %139 : vector<8x128xi32>
    %141 = arith.extui %140 : vector<8x128xi1> to vector<8x128xi32>
    %cst_18 = arith.constant dense<0> : vector<128xi32>
    %142 = vector.multi_reduction <add>, %141, %cst_18 [0] : vector<8x128xi32> to vector<128xi32>
    %143 = vector.shape_cast %142 : vector<128xi32> to vector<1x128xi32>
    %144 = arith.addi %135, %143 : vector<1x128xi32>
    %145 = vector.extract_strided_slice %9 {offsets = [120, 0], sizes = [8, 8], strides = [1, 1]} : vector<128x8xi32> to vector<8x8xi32>
    %146 = vector.extract_strided_slice %145 {offsets = [0, 0], sizes = [8, 1], strides = [1, 1]} : vector<8x8xi32> to vector<8x1xi32>
    %147 = vector.broadcast %146 : vector<8x1xi32> to vector<8x128xi32>
    %148 = vector.broadcast %3 : vector<1x128xi32> to vector<8x128xi32>
    %149 = arith.cmpi eq, %147, %148 : vector<8x128xi32>
    %150 = arith.extui %149 : vector<8x128xi1> to vector<8x128xi32>
    %cst_19 = arith.constant dense<0> : vector<128xi32>
    %151 = vector.multi_reduction <add>, %150, %cst_19 [0] : vector<8x128xi32> to vector<128xi32>
    %152 = vector.shape_cast %151 : vector<128xi32> to vector<1x128xi32>
    %153 = arith.addi %144, %152 : vector<1x128xi32>
    %c1_i32 = arith.constant 1 : i32
    %c0_20 = arith.constant 0 : index
    %c0_21 = arith.constant 0 : index
    %154 = vector.load %arg4[%c0_20, %c0_21] : memref<1x128xi32, #tpu.memory_space<vmem>>, vector<1x128xi32>
    %155 = arith.addi %154, %153 : vector<1x128xi32>
    %c0_22 = arith.constant 0 : index
    %c0_23 = arith.constant 0 : index
    %156 = vector.load %arg4[%c0_22, %c0_23] : memref<1x128xi32, #tpu.memory_space<vmem>>, vector<1x128xi32>
    tpu.vector_store %arg4[%c0_22, %c0_23], %155 {strides = array<i32>} : memref<1x128xi32, #tpu.memory_space<vmem>>, vector<1x128xi32>,
    return
  }
  func.func @transform_0(%arg0: i32, %arg1: i32) -> (i32, i32) {
    %c0_i32 = arith.constant 0 : i32
    %c0_i32_0 = arith.constant 0 : i32
    return %c0_i32, %arg0 : i32, i32
  }
  func.func @transform_1(%arg0: i32, %arg1: i32) -> (i32, i32) {
    %c0_i32 = arith.constant 0 : i32
    %c0_i32_0 = arith.constant 0 : i32
    return %c0_i32, %arg1 : i32, i32
  }
  func.func @transform_2(%arg0: i32, %arg1: i32) -> (i32, i32) {
    %c0_i32 = arith.constant 0 : i32
    %c0_i32_0 = arith.constant 0 : i32
    return %c0_i32, %arg0 : i32, i32
  }
}

</mosaic_0001>

<llo_original>
// kernel: tpu_custom_call.1
$region0: #{tpu_custom_call.1}
  #allocation0 [shape = 'u32[]', space=smem, size = 0x4, offset = 0x4, fixed_abs, tag = 'smem constant byte address 0x4 - core index']
  #allocation1 [shape = 'u32[72,128]{1,0:T(1,128)}', space=vmem, size = 0x9000, scoped, tag = 'internal scratch']
  %s0 = inlined_call_operand.hbm [shape: s32[1,128], index: 0, kind: input, shape index: {}]
  %s1 = inlined_call_operand.hbm [shape: s32[8,128], index: 1, kind: input, shape index: {}]
  %s2 = inlined_call_operand.hbm [shape: s32[1,128], index: 2, kind: output, shape index: {}]
  %s3 = sld [smem:[#allocation0]]
  $region30: #{tpu_custom_call.1} parent=0
    _
  %s5 = ssub.s32 1, %s3
  %s6 = scalar_select 0, %s5, %s3
  $region1: #{tpu_custom_call.1} parent=0
    #allocation2 [shape = 'u8[512]{0}', space=vmem, size = 0x400, scoped, tag = 'input window, operand 0, single buffered']
    #allocation3 [shape = 's32[1]{0}', space=sflag, size = 0x4, scoped, tag = 'scoped memory for tpu_custom_call.1']
    #allocation4 [shape = 's32[1]{0}', space=sflag, size = 0x4, scoped, tag = 'scoped memory for tpu_custom_call.1']
    #allocation5 [shape = 'u8[4096]{0}', space=vmem, size = 0x1000, scoped, tag = 'input window, operand 1, single buffered']
    #allocation6 [shape = 's32[1]{0}', space=sflag, size = 0x4, scoped, tag = 'scoped memory for tpu_custom_call.1']
    #allocation7 [shape = 'u8[512]{0}', space=vmem, size = 0x400, scoped, tag = 'output window, operand 0, single buffered']
    %7 = vsyncpa [#allocation3], 0
    %8 = vsyncpa [#allocation6], 0
    %9 = vsyncpa [#allocation4], 0
    // Predicated region
    $region2: #{tpu_custom_call.1} parent=1 // pred_check
      _
    $region3: #{tpu_custom_call.1} parent=1 // pred_check_branch
      %11 = sbr.rel (0) target = $region5
    $region4: #{tpu_custom_call.1} parent=1 // pred_region
      %13 = vsyncadd [#allocation3], 0
      %s15 = sshll.u32 %s0, 4
      %s16 = int_to_ptr.hbm [resolvable:$true] %s15
      %s17 = sshll.u32 [#allocation2], 4
      %s18 = int_to_ptr.vmem [resolvable:$true] %s17
      %20 = dma.hbm_to_vmem [thread:$0]  %s16, 16, %s18, [#allocation3]
    $region5: #{tpu_custom_call.1} parent=1 // pred_fallthru
      _
    // Predicated region
    $region6: #{tpu_custom_call.1} parent=1 // pred_check
      _
    $region7: #{tpu_custom_call.1} parent=1 // pred_check_branch
      %22 = sbr.rel (0) target = $region9
    $region8: #{tpu_custom_call.1} parent=1 // pred_region
      %24 = vsyncadd [#allocation6], 0
      %s26 = sshll.u32 %s1, 4
      %s27 = int_to_ptr.hbm [resolvable:$true] %s26
      %s28 = sshll.u32 [#allocation5], 4
      %s29 = int_to_ptr.vmem [resolvable:$true] %s28
      %31 = dma.hbm_to_vmem [thread:$0]  %s27, 128, %s29, [#allocation6]
    $region9: #{tpu_custom_call.1} parent=1 // pred_fallthru
      _
    // Predicated region
    $region10: #{tpu_custom_call.1} parent=1 // pred_check
      _
    $region11: #{tpu_custom_call.1} parent=1 // pred_check_branch
      %33 = sbr.rel (0) target = $region13
    $region12: #{tpu_custom_call.1} parent=1 // pred_region
      %35 = dma.done [#allocation3], 16
    $region13: #{tpu_custom_call.1} parent=1 // pred_fallthru
      _
    // Predicated region
    $region14: #{tpu_custom_call.1} parent=1 // pred_check
      _
    $region15: #{tpu_custom_call.1} parent=1 // pred_check_branch
      %37 = sbr.rel (0) target = $region17
    $region16: #{tpu_custom_call.1} parent=1 // pred_region
      %39 = dma.done [#allocation6], 128
    $region17: #{tpu_custom_call.1} parent=1 // pred_fallthru
      _
    %p40 = scmp.eq.s32.totalorder 0, 0
    // Predicated region
    $region18: #{tpu_custom_call.1} parent=1 // pred_check
      %p41 = pneg %p40
    $region19: #{tpu_custom_call.1} parent=1 // pred_check_branch
      %43 = sbr.rel (%p41) target = $region21
    $region20: #{tpu_custom_call.1} parent=1 // pred_region
      %44 = vst [vmem:[#allocation7] sm:$0x1] 0
    $region21: #{tpu_custom_call.1} parent=1 // pred_fallthru
      _
    %v45 = vld [vmem:[#allocation2] sm:$0x1]
    %v46 = vld [vmem:[#allocation5] sm:$0xff]
    %47 = vxpose.xlu0.b32.start [1/16] %v46, 128
    %48 = vxpose.xlu0.b32.cont [2/16] 0, 128
    %49 = vxpose.xlu0.b32.cont [3/16] 0, 128
    %50 = vxpose.xlu0.b32.cont [4/16] 0, 128
    %51 = vxpose.xlu0.b32.cont [5/16] 0, 128
    %52 = vxpose.xlu0.b32.cont [6/16] 0, 128
    %53 = vxpose.xlu0.b32.cont [7/16] 0, 128
    %54 = vxpose.xlu0.b32.cont [8/16] 0, 128
    %55 = vxpose.xlu0.b32.cont [9/16] 0, 128
    %56 = vxpose.xlu0.b32.cont [10/16] 0, 128
    %57 = vxpose.xlu0.b32.cont [11/16] 0, 128
    %58 = vxpose.xlu0.b32.cont [12/16] 0, 128
    %59 = vxpose.xlu0.b32.cont [13/16] 0, 128
    %60 = vxpose.xlu0.b32.cont [14/16] 0, 128
    %61 = vxpose.xlu0.b32.cont [15/16] 0, 128
    %62 = vxpose.xlu0.b32.end [16/16] 0, 128
    %v63 = vpop.trf.xlu0
    %v64 = vpop.trf.xlu0
    %v65 = vpop.trf.xlu0
    %v66 = vpop.trf.xlu0
    %v67 = vpop.trf.xlu0
    %v68 = vpop.trf.xlu0
    %v69 = vpop.trf.xlu0
    %v70 = vpop.trf.xlu0
    %v71 = vpop.trf.xlu0
    %v72 = vpop.trf.xlu0
    %v73 = vpop.trf.xlu0
    %v74 = vpop.trf.xlu0
    %v75 = vpop.trf.xlu0
    %v76 = vpop.trf.xlu0
    %v77 = vpop.trf.xlu0
    %v78 = vpop.trf.xlu0
    %79 = vset.pattern.permute.xlu0 0
    %80 = vperm.xlu0 %79, %v63
    %v81 = vpop.permute.xlu0 %80
    %v82 = vperm.slane %v45, 0
    %vm83 = vcmp.eq.s32.totalorder %v81, %v82
    %v84 = vsel %vm83, 1, 0
    %v85 = vrot.slane %v84, 4
    %v86 = vadd.s32 %v84, %v85
    %v87 = vrot.slane %v86, 2
    %v88 = vadd.s32 %v86, %v87
    %v89 = vrot.slane %v88, 1
    %v90 = vadd.s32 %v88, %v89
    %91 = vset.pattern.permute.xlu0 0
    %92 = vperm.xlu0 %91, %v64
    %v93 = vpop.permute.xlu0 %92
    %vm94 = vcmp.eq.s32.totalorder %v93, %v82
    %v95 = vsel %vm94, 1, 0
    %v96 = vrot.slane %v95, 4
    %v97 = vadd.s32 %v95, %v96
    %v98 = vrot.slane %v97, 2
    %v99 = vadd.s32 %v97, %v98
    %v100 = vrot.slane %v99, 1
    %v101 = vadd.s32 %v99, %v100
    %v102 = vadd.s32 %v90, %v101
    %103 = vset.pattern.permute.xlu0 0
    %104 = vperm.xlu0 %103, %v65
    %v105 = vpop.permute.xlu0 %104
    %vm106 = vcmp.eq.s32.totalorder %v105, %v82
    %v107 = vsel %vm106, 1, 0
    %v108 = vrot.slane %v107, 4
    %v109 = vadd.s32 %v107, %v108
    %v110 = vrot.slane %v109, 2
    %v111 = vadd.s32 %v109, %v110
    %v112 = vrot.slane %v111, 1
    %v113 = vadd.s32 %v111, %v112
    %v114 = vadd.s32 %v102, %v113
    %115 = vset.pattern.permute.xlu0 0
    %116 = vperm.xlu0 %115, %v66
    %v117 = vpop.permute.xlu0 %116
    %vm118 = vcmp.eq.s32.totalorder %v117, %v82
    %v119 = vsel %vm118, 1, 0
    %v120 = vrot.slane %v119, 4
    %v121 = vadd.s32 %v119, %v120
    %v122 = vrot.slane %v121, 2
    %v123 = vadd.s32 %v121, %v122
    %v124 = vrot.slane %v123, 1
    %v125 = vadd.s32 %v123, %v124
    %v126 = vadd.s32 %v114, %v125
    %127 = vset.pattern.permute.xlu0 0
    %128 = vperm.xlu0 %127, %v67
    %v129 = vpop.permute.xlu0 %128
    %vm130 = vcmp.eq.s32.totalorder %v129, %v82
    %v131 = vsel %vm130, 1, 0
    %v132 = vrot.slane %v131, 4
    %v133 = vadd.s32 %v131, %v132
    %v134 = vrot.slane %v133, 2
    %v135 = vadd.s32 %v133, %v134
    %v136 = vrot.slane %v135, 1
    %v137 = vadd.s32 %v135, %v136
    %v138 = vadd.s32 %v126, %v137
    %139 = vset.pattern.permute.xlu0 0
    %140 = vperm.xlu0 %139, %v68
    %v141 = vpop.permute.xlu0 %140
    %vm142 = vcmp.eq.s32.totalorder %v141, %v82
    %v143 = vsel %vm142, 1, 0
    %v144 = vrot.slane %v143, 4
    %v145 = vadd.s32 %v143, %v144
    %v146 = vrot.slane %v145, 2
    %v147 = vadd.s32 %v145, %v146
    %v148 = vrot.slane %v147, 1
    %v149 = vadd.s32 %v147, %v148
    %v150 = vadd.s32 %v138, %v149
    %151 = vset.pattern.permute.xlu0 0
    %152 = vperm.xlu0 %151, %v69
    %v153 = vpop.permute.xlu0 %152
    %vm154 = vcmp.eq.s32.totalorder %v153, %v82
    %v155 = vsel %vm154, 1, 0
    %v156 = vrot.slane %v155, 4
    %v157 = vadd.s32 %v155, %v156
    %v158 = vrot.slane %v157, 2
    %v159 = vadd.s32 %v157, %v158
    %v160 = vrot.slane %v159, 1
    %v161 = vadd.s32 %v159, %v160
    %v162 = vadd.s32 %v150, %v161
    %163 = vset.pattern.permute.xlu0 0
    %164 = vperm.xlu0 %163, %v70
    %v165 = vpop.permute.xlu0 %164
    %vm166 = vcmp.eq.s32.totalorder %v165, %v82
    %v167 = vsel %vm166, 1, 0
    %v168 = vrot.slane %v167, 4
    %v169 = vadd.s32 %v167, %v168
    %v170 = vrot.slane %v169, 2
    %v171 = vadd.s32 %v169, %v170
    %v172 = vrot.slane %v171, 1
    %v173 = vadd.s32 %v171, %v172
    %v174 = vadd.s32 %v162, %v173
    %175 = vset.pattern.permute.xlu0 0
    %176 = vperm.xlu0 %175, %v71
    %v177 = vpop.permute.xlu0 %176
    %vm178 = vcmp.eq.s32.totalorder %v177, %v82
    %v179 = vsel %vm178, 1, 0
    %v180 = vrot.slane %v179, 4
    %v181 = vadd.s32 %v179, %v180
    %v182 = vrot.slane %v181, 2
    %v183 = vadd.s32 %v181, %v182
    %v184 = vrot.slane %v183, 1
    %v185 = vadd.s32 %v183, %v184
    %v186 = vadd.s32 %v174, %v185
    %187 = vset.pattern.permute.xlu0 0
    %188 = vperm.xlu0 %187, %v72
    %v189 = vpop.permute.xlu0 %188
    %vm190 = vcmp.eq.s32.totalorder %v189, %v82
    %v191 = vsel %vm190, 1, 0
    %v192 = vrot.slane %v191, 4
    %v193 = vadd.s32 %v191, %v192
    %v194 = vrot.slane %v193, 2
    %v195 = vadd.s32 %v193, %v194
    %v196 = vrot.slane %v195, 1
    %v197 = vadd.s32 %v195, %v196
    %v198 = vadd.s32 %v186, %v197
    %199 = vset.pattern.permute.xlu0 0
    %200 = vperm.xlu0 %199, %v73
    %v201 = vpop.permute.xlu0 %200
    %vm202 = vcmp.eq.s32.totalorder %v201, %v82
    %v203 = vsel %vm202, 1, 0
    %v204 = vrot.slane %v203, 4
    %v205 = vadd.s32 %v203, %v204
    %v206 = vrot.slane %v205, 2
    %v207 = vadd.s32 %v205, %v206
    %v208 = vrot.slane %v207, 1
    %v209 = vadd.s32 %v207, %v208
    %v210 = vadd.s32 %v198, %v209
    %211 = vset.pattern.permute.xlu0 0
    %212 = vperm.xlu0 %211, %v74
    %v213 = vpop.permute.xlu0 %212
    %vm214 = vcmp.eq.s32.totalorder %v213, %v82
    %v215 = vsel %vm214, 1, 0
    %v216 = vrot.slane %v215, 4
    %v217 = vadd.s32 %v215, %v216
    %v218 = vrot.slane %v217, 2
    %v219 = vadd.s32 %v217, %v218
    %v220 = vrot.slane %v219, 1
    %v221 = vadd.s32 %v219, %v220
    %v222 = vadd.s32 %v210, %v221
    %223 = vset.pattern.permute.xlu0 0
    %224 = vperm.xlu0 %223, %v75
    %v225 = vpop.permute.xlu0 %224
    %vm226 = vcmp.eq.s32.totalorder %v225, %v82
    %v227 = vsel %vm226, 1, 0
    %v228 = vrot.slane %v227, 4
    %v229 = vadd.s32 %v227, %v228
    %v230 = vrot.slane %v229, 2
    %v231 = vadd.s32 %v229, %v230
    %v232 = vrot.slane %v231, 1
    %v233 = vadd.s32 %v231, %v232
    %v234 = vadd.s32 %v222, %v233
    %235 = vset.pattern.permute.xlu0 0
    %236 = vperm.xlu0 %235, %v76
    %v237 = vpop.permute.xlu0 %236
    %vm238 = vcmp.eq.s32.totalorder %v237, %v82
    %v239 = vsel %vm238, 1, 0
    %v240 = vrot.slane %v239, 4
    %v241 = vadd.s32 %v239, %v240
    %v242 = vrot.slane %v241, 2
    %v243 = vadd.s32 %v241, %v242
    %v244 = vrot.slane %v243, 1
    %v245 = vadd.s32 %v243, %v244
    %v246 = vadd.s32 %v234, %v245
    %247 = vset.pattern.permute.xlu0 0
    %248 = vperm.xlu0 %247, %v77
    %v249 = vpop.permute.xlu0 %248
    %vm250 = vcmp.eq.s32.totalorder %v249, %v82
    %v251 = vsel %vm250, 1, 0
    %v252 = vrot.slane %v251, 4
    %v253 = vadd.s32 %v251, %v252
    %v254 = vrot.slane %v253, 2
    %v255 = vadd.s32 %v253, %v254
    %v256 = vrot.slane %v255, 1
    %v257 = vadd.s32 %v255, %v256
    %v258 = vadd.s32 %v246, %v257
    %259 = vset.pattern.permute.xlu0 0
    %260 = vperm.xlu0 %259, %v78
    %v261 = vpop.permute.xlu0 %260
    %vm262 = vcmp.eq.s32.totalorder %v261, %v82
    %v263 = vsel %vm262, 1, 0
    %v264 = vrot.slane %v263, 4
    %v265 = vadd.s32 %v263, %v264
    %v266 = vrot.slane %v265, 2
    %v267 = vadd.s32 %v265, %v266
    %v268 = vrot.slane %v267, 1
    %v269 = vadd.s32 %v267, %v268
    %v270 = vadd.s32 %v258, %v269
    %v271 = vld [vmem:[#allocation7] sm:$0x1]
    %v272 = vadd.s32 %v271, %v270
    %273 = vst [vmem:[#allocation7] sm:$0x1] %v272
    // Predicated region
    $region22: #{tpu_custom_call.1} parent=1 // pred_check
      _
    $region23: #{tpu_custom_call.1} parent=1 // pred_check_branch
      %275 = sbr.rel (0) target = $region25
    $region24: #{tpu_custom_call.1} parent=1 // pred_region
      %277 = vsyncadd [#allocation4], 0
      %s279 = sshll.u32 [#allocation7], 4
      %s280 = int_to_ptr.vmem [resolvable:$true] %s279
      %s281 = sshll.u32 %s2, 4
      %s282 = int_to_ptr.hbm [resolvable:$true] %s281
      %284 = dma.vmem_to_hbm [thread:$0]  %s280, 16, %s282, [#allocation4]
    $region25: #{tpu_custom_call.1} parent=1 // pred_fallthru
      _
    // Predicated region
    $region26: #{tpu_custom_call.1} parent=1 // pred_check
      _
    $region27: #{tpu_custom_call.1} parent=1 // pred_check_branch
      %286 = sbr.rel (0) target = $region29
    $region28: #{tpu_custom_call.1} parent=1 // pred_region
      %288 = dma.done [#allocation4], 16
    $region29: #{tpu_custom_call.1} parent=1 // pred_fallthru
      _
    %289 = vsyncpa [#allocation3], 1
    %290 = vsyncpa [#allocation6], 1
    %291 = vsyncpa [#allocation4], 1

</llo_original>
